<compile_context>
chip_gen: v7x
topology: tpu7x:2x2x1
jax: 0.10.0
libtpu: 0.0.40
codegen_flags: <defaults>
</compile_context>

<pallas_src>
import functools

import jax
import jax.numpy as jnp
from jax import lax
from jax.experimental import pallas as pl
from jax.experimental.pallas import tpu as pltpu

LANE = 128


def _ceil_div(a, b):
    return -(-a // b)


def _partials_kernel(x_ref, t_ref,
                     sum_t_ref, sum_pos_ref, sum_neg_ref,
                     acc_t, acc_pos, acc_neg, *,
                     block_rows, inner_steps, n_valid, needs_mask):
    """Accumulates sum(t), sum(t*lg(x)), sum((1-t)*lg(-x)) for one split."""
    i = pl.program_id(1)

    @pl.when(i == 0)
    def _init():
        acc_t[...] = jnp.zeros_like(acc_t)
        acc_pos[...] = jnp.zeros_like(acc_pos)
        acc_neg[...] = jnp.zeros_like(acc_neg)

    groups = block_rows // 8

    def _fold(v):
        # (block_rows,128) -> (groups,8,128) keeps (8,128) vreg tiles intact;
        # summing the leading axis is pure in-register VPU adds (no XLU).
        return v.reshape(groups, 8, LANE).sum(axis=0)

    def _accumulate(x, t, not_t):
        # single logsigmoid: ls(x) = min(x,0) - log1p(exp(-|x|)); ls(-x)=ls(x)-x
        ls = jnp.minimum(x, 0.0) - jnp.log1p(jnp.exp(-jnp.abs(x)))
        ls_neg = ls - x
        acc_t[...] += _fold(t)
        acc_pos[...] += _fold(t * ls)
        acc_neg[...] += _fold(not_t * ls_neg)

    # native-dtype DMA, upcast in-register (free VPU work).
    x = x_ref[...].astype(jnp.float32)
    t = t_ref[...].astype(jnp.float32)

    if needs_mask:
        s = pl.program_id(0)
        logical_block = s * inner_steps + i
        # first logical block containing padded / out-of-range / garbage
        # elements; earlier blocks take the unmasked fast path.
        first_partial = n_valid // (block_rows * LANE)
        full_rows = n_valid // LANE          # static python ints
        rem_lanes = n_valid % LANE

        @pl.when(logical_block < first_partial)
        def _fast():
            _accumulate(x, t, 1.0 - t)

        @pl.when(logical_block >= first_partial)
        def _masked():
            # 64-bit-safe masking: compare global row index + lane remainder.
            ridx = lax.broadcasted_iota(jnp.int32, (block_rows, LANE), 0)
            grow = logical_block * block_rows + ridx
            valid = grow < full_rows
            if rem_lanes:
                lidx = lax.broadcasted_iota(jnp.int32, (block_rows, LANE), 1)
                valid = valid | ((grow == full_rows) & (lidx < rem_lanes))
            # x is also masked: partial edge blocks may contain stale VMEM
            # garbage (NaN/Inf) beyond the array; 0*NaN would poison the sums.
            xm = jnp.where(valid, x, 0.0)
            tm = jnp.where(valid, t, 0.0)
            ntm = jnp.where(valid, 1.0 - t, 0.0)
            _accumulate(xm, tm, ntm)
    else:
        _accumulate(x, t, 1.0 - t)

    @pl.when(i == pl.num_programs(1) - 1)
    def _finalize():
        sum_t_ref[...] = acc_t[...]
        sum_pos_ref[...] = acc_pos[...]
        sum_neg_ref[...] = acc_neg[...]


def bce_sample_balance_loss(_input, target, reduction="element_wise", *,
                            block_rows=2048, num_splits=1):
    """Pallas implementation of BCESampleBalanceLoss.forward.

    num_splits=1 (default) for single-TensorCore chips (v5e/v6e);
    pass num_splits=2 on v7x to shard the leading "parallel" axis across TCs.
    """
    assert _input.shape == target.shape
    n_sample = int(_input.size)
    assert n_sample > 0

    # minimum sublane multiple implied by the narrower native dtype
    # (f32 -> 8, bf16 -> 16, int8/bool -> 32).
    def _sub_req(dt):
        return max(8, 32 // jnp.dtype(dt).itemsize)

    sub = max(_sub_req(_input.dtype), _sub_req(target.dtype))

    x = _input.reshape(-1)
    t = target.reshape(-1)

    # Minimal zero pad only when n_sample is not already a multiple of the
    # sublane*lane unit (pad values are masked out in-kernel, so zeros are
    # fine; the common aligned case performs no HBM-side pad copy at all).
    unit = sub * LANE
    padded = _ceil_div(n_sample, unit) * unit
    pad = padded - n_sample
    if pad:
        x = jnp.pad(x, (0, pad))
        t = jnp.pad(t, (0, pad))
    rows = padded // LANE

    # Tile sizing: big lane-dense blocks (1 MiB/input f32 at the default),
    # capped at the array itself for small inputs.
    br = _ceil_div(block_rows, sub) * sub
    br = min(br, rows)
    n_blocks = _ceil_div(rows, br)

    # Leading "parallel" axis: sharded across TensorCores on v7x, a cheap
    # serial outer loop on v5e/v6e (default 1 split -> degenerate axis).
    # TODO(synk): on v7x verify with the profiler that "parallel" actually
    # shards across both TCs; otherwise switch to pltpu.CORE_PARALLEL.
    splits = max(1, min(num_splits, n_blocks))
    inner_steps = _ceil_div(n_blocks, splits)
    covered = splits * inner_steps * br * LANE
    needs_mask = covered != n_sample

    x2 = x.reshape(rows, LANE)
    t2 = t.reshape(rows, LANE)

    last_block = n_blocks - 1

    def in_map(s, i):
        # clamp so the DMA never targets a block past the array; duplicated
        # (clamped) blocks are zeroed by the in-kernel (pl.when-gated) mask.
        return (jnp.minimum(s * inner_steps + i, last_block), 0)

    kernel = functools.partial(
        _partials_kernel,
        block_rows=br, inner_steps=inner_steps,
        n_valid=n_sample, needs_mask=needs_mask)

    # One lane-dense (8,128) partial tile per split per sum.
    out_shapes = tuple(jax.ShapeDtypeStruct((8, splits * LANE), jnp.float32)
                       for _ in range(3))
    out_spec = pl.BlockSpec((8, LANE), lambda s, i: (0, s))

    # Double-buffered input blocks + generous headroom for the tiny
    # accumulators/outputs and compiler-internal scratch.
    in_block_bytes = br * LANE * (x2.dtype.itemsize + t2.dtype.itemsize)
    vmem_limit_bytes = int(min(2 * in_block_bytes + (8 << 20), 64 << 20))

    sum_t_tiles, sum_pos_tiles, sum_neg_tiles = pl.pallas_call(
        kernel,
        out_shape=out_shapes,
        grid_spec=pltpu.PrefetchScalarGridSpec(
            num_scalar_prefetch=0,
            grid=(splits, inner_steps),
            in_specs=[pl.BlockSpec((br, LANE), in_map),
                      pl.BlockSpec((br, LANE), in_map)],
            out_specs=[out_spec, out_spec, out_spec],
            scratch_shapes=[pltpu.VMEM((8, LANE), jnp.float32)] * 3,
        ),
        compiler_params=pltpu.CompilerParams(
            dimension_semantics=("parallel", "arbitrary"),
            vmem_limit_bytes=vmem_limit_bytes),
    )(x2, t2)

    # tiny epilogue reductions + scalar glue (mathematically identical to the
    # PyTorch reference since alpha is a global scalar).
    sum_t = jnp.sum(sum_t_tiles)
    sum_pos = jnp.sum(sum_pos_tiles)
    sum_neg = jnp.sum(sum_neg_tiles)

    n_pos = sum_t
    n_neg = jnp.float32(n_sample) - n_pos
    alpha = jnp.where(n_pos > 0, n_neg / jnp.float32(n_sample), jnp.float32(1e-5))

    # sum(loss) = -alpha * sum(t*lg(x)) - (1-alpha) * sum((1-t)*lg(-x))
    loss_sum = -alpha * sum_pos - (1.0 - alpha) * sum_neg

    if reduction == "element_wise":
        return loss_sum / jnp.float32(n_sample)
    elif reduction == "sum":
        return loss_sum
    elif reduction == "weight_mean":
        return loss_sum / (alpha * n_pos + (1.0 - alpha) * n_neg)
    # TODO(synk): PyTorch falls through returning the unreduced per-element
    # loss tensor for unknown reduction strings; not materialized here.
    raise ValueError(f"unsupported reduction: {reduction}")


def _reference(_input, target, reduction="element_wise"):
    x = _input.astype(jnp.float32)
    t = target.astype(jnp.float32)
    n_sample = x.size
    n_pos = jnp.sum(t)
    n_neg = n_sample - n_pos
    alpha = jnp.where(n_pos > 0, n_neg / n_sample, 1e-5)
    lg = jax.nn.log_sigmoid
    loss = -alpha * t * lg(x) - (1.0 - alpha) * (1.0 - t) * lg(-x)
    if reduction == "element_wise":
        return jnp.mean(loss)
    elif reduction == "sum":
        return jnp.sum(loss)
    elif reduction == "weight_mean":
        return jnp.sum(loss) / (alpha * n_pos + (1.0 - alpha) * n_neg)
    return loss


if __name__ == "__main__":
    key = jax.random.PRNGKey(0)

    def make_inputs(shape, dtype, kp, kt):
        logits = (jax.random.normal(kp, shape, dtype=jnp.float32) * 2.0).astype(dtype)
        tgt = jax.random.bernoulli(kt, p=0.25, shape=shape).astype(dtype)
        return logits, tgt

    # name, shape, dtype, kwargs
    cases = [
        # aligned fast path, single block
        ("nchw_f32", (2, 4, 16, 16), jnp.float32, {}),
        # ragged: in-kernel pl.when-gated tail mask
        ("ragged_f32", (2, 3, 15, 17), jnp.float32, {}),
        # 4 blocks, 2 splits, exact coverage (no mask)
        ("multiblock_split_f32", (2, 4, 64, 64), jnp.float32,
         dict(block_rows=64, num_splits=2)),
        # 3 blocks, 2 splits -> clamped duplicate block fully masked
        ("clamped_split_f32", (2, 4, 48, 64), jnp.float32,
         dict(block_rows=64, num_splits=2)),
        # native bf16 DMA, 2 inner steps
        ("bf16", (2, 4, 32, 32), jnp.bfloat16, dict(block_rows=32)),
    ]

    ok = True
    for name, shape, dtype, kw in cases:
        key, kp, kt = jax.random.split(key, 3)
        x, tgt = make_inputs(shape, dtype, kp, kt)
        for red in ("element_wise", "sum", "weight_mean"):
            out = jax.block_until_ready(
                bce_sample_balance_loss(x, tgt, reduction=red, **kw))
            ref = jax.block_until_ready(_reference(x, tgt, reduction=red))
            if not jnp.allclose(out, ref, rtol=2e-5, atol=1e-5):
                ok = False
                print(f"MISMATCH case={name} reduction={red}: kernel={out} ref={ref}")

    if ok:
        print("KERNEL_OK")
</pallas_src>

<mosaic_0001>
module attributes {stable_mosaic.version = 11 : i64} {
  func.func @_partials_kernel(%arg0: i32, %arg1: i32, %arg2: memref<16x128xf32, #tpu.memory_space<vmem>>, %arg3: memref<16x128xf32, #tpu.memory_space<vmem>>, %arg4: memref<8x128xf32, #tpu.memory_space<vmem>>, %arg5: memref<8x128xf32, #tpu.memory_space<vmem>>, %arg6: memref<8x128xf32, #tpu.memory_space<vmem>>, %arg7: memref<8x128xf32, #tpu.memory_space<vmem>>, %arg8: memref<8x128xf32, #tpu.memory_space<vmem>>, %arg9: memref<8x128xf32, #tpu.memory_space<vmem>>) attributes {dimension_semantics = [#tpu.dimension_semantics<parallel>, #tpu.dimension_semantics<arbitrary>], iteration_bounds = array<i64: 1, 1>, scalar_prefetch = 0 : i64, scratch_operands = 3 : i64, tpu.core_type = #tpu.core_type<tc>, window_params = [{transform_indices = @transform_0, window_bounds = array<i64: 16, 128>}, {transform_indices = @transform_1, window_bounds = array<i64: 16, 128>}, {transform_indices = @transform_2, window_bounds = array<i64: 8, 128>}, {transform_indices = @transform_3, window_bounds = array<i64: 8, 128>}, {transform_indices = @transform_4, window_bounds = array<i64: 8, 128>}]} {
    %c0_i32 = arith.constant 0 : i32
    %0 = arith.cmpi eq, %arg1, %c0_i32 : i32
    %1 = arith.extui %0 : i1 to i32
    %c0_i32_0 = arith.constant 0 : i32
    %2 = arith.cmpi ne, %1, %c0_i32_0 : i32
    scf.if %2 {
      %cst_23 = arith.constant 0.000000e+00 : f32
      %36 = vector.broadcast %cst_23 : f32 to vector<8x128xf32>
      %c0_24 = arith.constant 0 : index
      %c0_25 = arith.constant 0 : index
      %37 = vector.load %arg7[%c0_24, %c0_25] : memref<8x128xf32, #tpu.memory_space<vmem>>, vector<8x128xf32>
      tpu.vector_store %arg7[%c0_24, %c0_25], %36 {strides = array<i32>} : memref<8x128xf32, #tpu.memory_space<vmem>>, vector<8x128xf32>,
      %cst_26 = arith.constant 0.000000e+00 : f32
      %38 = vector.broadcast %cst_26 : f32 to vector<8x128xf32>
      %c0_27 = arith.constant 0 : index
      %c0_28 = arith.constant 0 : index
      %39 = vector.load %arg8[%c0_27, %c0_28] : memref<8x128xf32, #tpu.memory_space<vmem>>, vector<8x128xf32>
      tpu.vector_store %arg8[%c0_27, %c0_28], %38 {strides = array<i32>} : memref<8x128xf32, #tpu.memory_space<vmem>>, vector<8x128xf32>,
      %cst_29 = arith.constant 0.000000e+00 : f32
      %40 = vector.broadcast %cst_29 : f32 to vector<8x128xf32>
      %c0_30 = arith.constant 0 : index
      %c0_31 = arith.constant 0 : index
      %41 = vector.load %arg9[%c0_30, %c0_31] : memref<8x128xf32, #tpu.memory_space<vmem>>, vector<8x128xf32>
      tpu.vector_store %arg9[%c0_30, %c0_31], %40 {strides = array<i32>} : memref<8x128xf32, #tpu.memory_space<vmem>>, vector<8x128xf32>,
    } else {
    }
    %c0 = arith.constant 0 : index
    %c0_1 = arith.constant 0 : index
    %3 = vector.load %arg2[%c0, %c0_1] : memref<16x128xf32, #tpu.memory_space<vmem>>, vector<16x128xf32>
    %c0_2 = arith.constant 0 : index
    %c0_3 = arith.constant 0 : index
    %4 = vector.load %arg3[%c0_2, %c0_3] : memref<16x128xf32, #tpu.memory_space<vmem>>, vector<16x128xf32>
    %cst = arith.constant 1.000000e+00 : f32
    %5 = vector.broadcast %cst : f32 to vector<16x128xf32>
    %6 = arith.subf %5, %4 : vector<16x128xf32>
    %cst_4 = arith.constant 0.000000e+00 : f32
    %7 = vector.broadcast %cst_4 : f32 to vector<16x128xf32>
    %8 = arith.minimumf %3, %7 : vector<16x128xf32>
    %9 = math.absf %3 : vector<16x128xf32>
    %cst_5 = arith.constant 0.000000e+00 : f32
    %10 = vector.broadcast %cst_5 : f32 to vector<16x128xf32>
    %11 = arith.subf %10, %9 : vector<16x128xf32>
    %12 = math.exp %11 : vector<16x128xf32>
    %13 = math.log1p %12 : vector<16x128xf32>
    %14 = arith.subf %8, %13 : vector<16x128xf32>
    %15 = arith.subf %14, %3 : vector<16x128xf32>
    %c0_6 = arith.constant 0 : index
    %c0_7 = arith.constant 0 : index
    %16 = vector.load %arg7[%c0_6, %c0_7] : memref<8x128xf32, #tpu.memory_space<vmem>>, vector<8x128xf32>
    %17 = vector.shape_cast %4 : vector<16x128xf32> to vector<2x8x128xf32>
    %cst_8 = arith.constant dense<0.000000e+00> : vector<8x128xf32>
    %18 = vector.multi_reduction <add>, %17, %cst_8 [0] : vector<2x8x128xf32> to vector<8x128xf32>
    %19 = arith.addf %16, %18 : vector<8x128xf32>
    %c0_9 = arith.constant 0 : index
    %c0_10 = arith.constant 0 : index
    %20 = vector.load %arg7[%c0_9, %c0_10] : memref<8x128xf32, #tpu.memory_space<vmem>>, vector<8x128xf32>
    tpu.vector_store %arg7[%c0_9, %c0_10], %19 {strides = array<i32>} : memref<8x128xf32, #tpu.memory_space<vmem>>, vector<8x128xf32>,
    %c0_11 = arith.constant 0 : index
    %c0_12 = arith.constant 0 : index
    %21 = vector.load %arg8[%c0_11, %c0_12] : memref<8x128xf32, #tpu.memory_space<vmem>>, vector<8x128xf32>
    %22 = arith.mulf %4, %14 : vector<16x128xf32>
    %23 = vector.shape_cast %22 : vector<16x128xf32> to vector<2x8x128xf32>
    %cst_13 = arith.constant dense<0.000000e+00> : vector<8x128xf32>
    %24 = vector.multi_reduction <add>, %23, %cst_13 [0] : vector<2x8x128xf32> to vector<8x128xf32>
    %25 = arith.addf %21, %24 : vector<8x128xf32>
    %c0_14 = arith.constant 0 : index
    %c0_15 = arith.constant 0 : index
    %26 = vector.load %arg8[%c0_14, %c0_15] : memref<8x128xf32, #tpu.memory_space<vmem>>, vector<8x128xf32>
    tpu.vector_store %arg8[%c0_14, %c0_15], %25 {strides = array<i32>} : memref<8x128xf32, #tpu.memory_space<vmem>>, vector<8x128xf32>,
    %c0_16 = arith.constant 0 : index
    %c0_17 = arith.constant 0 : index
    %27 = vector.load %arg9[%c0_16, %c0_17] : memref<8x128xf32, #tpu.memory_space<vmem>>, vector<8x128xf32>
    %28 = arith.mulf %6, %15 : vector<16x128xf32>
    %29 = vector.shape_cast %28 : vector<16x128xf32> to vector<2x8x128xf32>
    %cst_18 = arith.constant dense<0.000000e+00> : vector<8x128xf32>
    %30 = vector.multi_reduction <add>, %29, %cst_18 [0] : vector<2x8x128xf32> to vector<8x128xf32>
    %31 = arith.addf %27, %30 : vector<8x128xf32>
    %c0_19 = arith.constant 0 : index
    %c0_20 = arith.constant 0 : index
    %32 = vector.load %arg9[%c0_19, %c0_20] : memref<8x128xf32, #tpu.memory_space<vmem>>, vector<8x128xf32>
    tpu.vector_store %arg9[%c0_19, %c0_20], %31 {strides = array<i32>} : memref<8x128xf32, #tpu.memory_space<vmem>>, vector<8x128xf32>,
    %c0_i32_21 = arith.constant 0 : i32
    %33 = arith.cmpi eq, %arg1, %c0_i32_21 : i32
    %34 = arith.extui %33 : i1 to i32
    %c0_i32_22 = arith.constant 0 : i32
    %35 = arith.cmpi ne, %34, %c0_i32_22 : i32
    scf.if %35 {
      %c0_23 = arith.constant 0 : index
      %c0_24 = arith.constant 0 : index
      %36 = vector.load %arg7[%c0_23, %c0_24] : memref<8x128xf32, #tpu.memory_space<vmem>>, vector<8x128xf32>
      %c0_25 = arith.constant 0 : index
      %c0_26 = arith.constant 0 : index
      %37 = vector.load %arg4[%c0_25, %c0_26] : memref<8x128xf32, #tpu.memory_space<vmem>>, vector<8x128xf32>
      tpu.vector_store %arg4[%c0_25, %c0_26], %36 {strides = array<i32>} : memref<8x128xf32, #tpu.memory_space<vmem>>, vector<8x128xf32>,
      %c0_27 = arith.constant 0 : index
      %c0_28 = arith.constant 0 : index
      %38 = vector.load %arg8[%c0_27, %c0_28] : memref<8x128xf32, #tpu.memory_space<vmem>>, vector<8x128xf32>
      %c0_29 = arith.constant 0 : index
      %c0_30 = arith.constant 0 : index
      %39 = vector.load %arg5[%c0_29, %c0_30] : memref<8x128xf32, #tpu.memory_space<vmem>>, vector<8x128xf32>
      tpu.vector_store %arg5[%c0_29, %c0_30], %38 {strides = array<i32>} : memref<8x128xf32, #tpu.memory_space<vmem>>, vector<8x128xf32>,
      %c0_31 = arith.constant 0 : index
      %c0_32 = arith.constant 0 : index
      %40 = vector.load %arg9[%c0_31, %c0_32] : memref<8x128xf32, #tpu.memory_space<vmem>>, vector<8x128xf32>
      %c0_33 = arith.constant 0 : index
      %c0_34 = arith.constant 0 : index
      %41 = vector.load %arg6[%c0_33, %c0_34] : memref<8x128xf32, #tpu.memory_space<vmem>>, vector<8x128xf32>
      tpu.vector_store %arg6[%c0_33, %c0_34], %40 {strides = array<i32>} : memref<8x128xf32, #tpu.memory_space<vmem>>, vector<8x128xf32>,
    } else {
    }
    return
  }
  func.func @transform_0(%arg0: i32, %arg1: i32) -> (i32, i32) {
    %c1_i32 = arith.constant 1 : i32
    %0 = arith.muli %arg0, %c1_i32 : i32
    %1 = arith.addi %0, %arg1 : i32
    %c0_i32 = arith.constant 0 : i32
    %2 = arith.minsi %1, %c0_i32 : i32
    %c0_i32_0 = arith.constant 0 : i32
    %c0_i32_1 = arith.constant 0 : i32
    return %2, %c0_i32_0 : i32, i32
  }
  func.func @transform_1(%arg0: i32, %arg1: i32) -> (i32, i32) {
    %c1_i32 = arith.constant 1 : i32
    %0 = arith.muli %arg0, %c1_i32 : i32
    %1 = arith.addi %0, %arg1 : i32
    %c0_i32 = arith.constant 0 : i32
    %2 = arith.minsi %1, %c0_i32 : i32
    %c0_i32_0 = arith.constant 0 : i32
    %c0_i32_1 = arith.constant 0 : i32
    return %2, %c0_i32_0 : i32, i32
  }
  func.func @transform_2(%arg0: i32, %arg1: i32) -> (i32, i32) {
    %c0_i32 = arith.constant 0 : i32
    %c0_i32_0 = arith.constant 0 : i32
    return %c0_i32, %arg0 : i32, i32
  }
  func.func @transform_3(%arg0: i32, %arg1: i32) -> (i32, i32) {
    %c0_i32 = arith.constant 0 : i32
    %c0_i32_0 = arith.constant 0 : i32
    return %c0_i32, %arg0 : i32, i32
  }
  func.func @transform_4(%arg0: i32, %arg1: i32) -> (i32, i32) {
    %c0_i32 = arith.constant 0 : i32
    %c0_i32_0 = arith.constant 0 : i32
    return %c0_i32, %arg0 : i32, i32
  }
}

</mosaic_0001>

<llo_original>
// kernel: tpu_custom_call.1
$region0: #{tpu_custom_call.1}
  #allocation0 [shape = 'u32[]', space=smem, size = 0x4, offset = 0x4, fixed_abs, tag = 'smem constant byte address 0x4 - core index']
  #allocation1 [shape = 'u32[144,128]{1,0:T(1,128)}', space=vmem, size = 0x12000, scoped, tag = 'internal scratch']
  #allocation2 [shape = 'f32[8,128]{1,0:T(8,128)}', space=vmem, size = 0x1000, scoped, tag = 'scratch operand']
  #allocation3 [shape = 'f32[8,128]{1,0:T(8,128)}', space=vmem, size = 0x1000, scoped, tag = 'scratch operand']
  #allocation4 [shape = 'f32[8,128]{1,0:T(8,128)}', space=vmem, size = 0x1000, scoped, tag = 'scratch operand']
  %s0 = inlined_call_operand.hbm [shape: f32[16,128], index: 0, kind: input, shape index: {}]
  %s1 = inlined_call_operand.hbm [shape: f32[16,128], index: 1, kind: input, shape index: {}]
  %s2 = inlined_call_operand.hbm [shape: f32[8,128], index: 2, kind: output, shape index: {0}]
  %s3 = inlined_call_operand.hbm [shape: f32[8,128], index: 3, kind: output, shape index: {1}]
  %s4 = inlined_call_operand.hbm [shape: f32[8,128], index: 4, kind: output, shape index: {2}]
  %5 = xla_tuple %s2, %s3, %s4
  %s6 = sld [smem:[#allocation0]]
  $region50: #{tpu_custom_call.1} parent=0
    _
  %s8 = ssub.s32 1, %s6
  %s9 = scalar_select 0, %s8, %s6
  $region1: #{tpu_custom_call.1} parent=0
    #allocation5 [shape = 'u8[8192]{0}', space=vmem, size = 0x2000, scoped, tag = 'input window, operand 0, single buffered']
    #allocation6 [shape = 's32[1]{0}', space=sflag, size = 0x4, scoped, tag = 'scoped memory for tpu_custom_call.1']
    #allocation7 [shape = 's32[1]{0}', space=sflag, size = 0x4, scoped, tag = 'scoped memory for tpu_custom_call.1']
    #allocation8 [shape = 'u8[8192]{0}', space=vmem, size = 0x2000, scoped, tag = 'input window, operand 1, single buffered']
    #allocation9 [shape = 's32[1]{0}', space=sflag, size = 0x4, scoped, tag = 'scoped memory for tpu_custom_call.1']
    #allocation10 [shape = 'u8[4096]{0}', space=vmem, size = 0x1000, scoped, tag = 'output window, operand 0, single buffered']
    #allocation11 [shape = 'u8[4096]{0}', space=vmem, size = 0x1000, scoped, tag = 'output window, operand 1, single buffered']
    #allocation12 [shape = 's32[1]{0}', space=sflag, size = 0x4, scoped, tag = 'scoped memory for tpu_custom_call.1']
    #allocation13 [shape = 'u8[4096]{0}', space=vmem, size = 0x1000, scoped, tag = 'output window, operand 2, single buffered']
    %10 = vsyncpa [#allocation6], 0
    %11 = vsyncpa [#allocation9], 0
    %12 = vsyncpa [#allocation7], 0
    %13 = vsyncpa [#allocation12], 0
    // Predicated region
    $region2: #{tpu_custom_call.1} parent=1 // pred_check
      _
    $region3: #{tpu_custom_call.1} parent=1 // pred_check_branch
      %15 = sbr.rel (0) target = $region5
    $region4: #{tpu_custom_call.1} parent=1 // pred_region
      %s16 = sadd.s32 0, 0
      %p17 = scmp.lt.s32.totalorder %s16, 0
      %s18 = scalar_select %p17, %s16, 0
      %s19 = smul.u32 2, %s18
      %s21 = ssub.s32 256, 256
      %22 = vsyncadd [#allocation6], %s21
      %s23 = smul.addr %s19, 128
      %s24 = scalar_lea.hbm %s0, %s23
      %s25 = sshll.u32 [#allocation5], 4
      %s26 = int_to_ptr.vmem [resolvable:$true] %s25
      %31 = dma.hbm_to_vmem [thread:$0]  %s24, 256, %s26, [#allocation6], 128, 128, 8
    $region5: #{tpu_custom_call.1} parent=1 // pred_fallthru
      _
    // Predicated region
    $region6: #{tpu_custom_call.1} parent=1 // pred_check
      _
    $region7: #{tpu_custom_call.1} parent=1 // pred_check_branch
      %33 = sbr.rel (0) target = $region9
    $region8: #{tpu_custom_call.1} parent=1 // pred_region
      %s34 = sadd.s32 0, 0
      %p35 = scmp.lt.s32.totalorder %s34, 0
      %s36 = scalar_select %p35, %s34, 0
      %s37 = smul.u32 2, %s36
      %s39 = ssub.s32 256, 256
      %40 = vsyncadd [#allocation9], %s39
      %s41 = smul.addr %s37, 128
      %s42 = scalar_lea.hbm %s1, %s41
      %s43 = sshll.u32 [#allocation8], 4
      %s44 = int_to_ptr.vmem [resolvable:$true] %s43
      %49 = dma.hbm_to_vmem [thread:$0]  %s42, 256, %s44, [#allocation9], 128, 128, 8
    $region9: #{tpu_custom_call.1} parent=1 // pred_fallthru
      _
    // Predicated region
    $region10: #{tpu_custom_call.1} parent=1 // pred_check
      _
    $region11: #{tpu_custom_call.1} parent=1 // pred_check_branch
      %51 = sbr.rel (0) target = $region13
    $region12: #{tpu_custom_call.1} parent=1 // pred_region
      %52 = dma.done [#allocation6], 256
    $region13: #{tpu_custom_call.1} parent=1 // pred_fallthru
      _
    // Predicated region
    $region14: #{tpu_custom_call.1} parent=1 // pred_check
      _
    $region15: #{tpu_custom_call.1} parent=1 // pred_check_branch
      %54 = sbr.rel (0) target = $region17
    $region16: #{tpu_custom_call.1} parent=1 // pred_region
      %55 = dma.done [#allocation9], 256
    $region17: #{tpu_custom_call.1} parent=1 // pred_fallthru
      _
    %s56 = sadd.s32 0, 0
    %p57 = scmp.lt.s32.totalorder %s56, 0
    %s58 = scalar_select %p57, %s56, 0
    %s59 = smul.u32 2, %s58
    %s60 = sadd.s32 0, 0
    %p61 = scmp.lt.s32.totalorder %s60, 0
    %s62 = scalar_select %p61, %s60, 0
    %s63 = smul.u32 2, %s62
    %p64 = scmp.eq.s32.totalorder 0, 0
    // Predicated region
    $region18: #{tpu_custom_call.1} parent=1 // pred_check
      %p65 = pneg %p64
    $region19: #{tpu_custom_call.1} parent=1 // pred_check_branch
      %67 = sbr.rel (%p65) target = $region21
    $region20: #{tpu_custom_call.1} parent=1 // pred_region
      %68 = vst [vmem:[#allocation2] sm:$0xff] 0.0
      %69 = vst [vmem:[#allocation3] sm:$0xff] 0.0
      %70 = vst [vmem:[#allocation4] sm:$0xff] 0.0
    $region21: #{tpu_custom_call.1} parent=1 // pred_fallthru
      _
    %v71 = vld [vmem:[#allocation5] sm:$0xff]
    %v72 = vld [vmem:[#allocation5 + $0x8] sm:$0xff]
    %v73 = vld [vmem:[#allocation8] sm:$0xff]
    %v74 = vld [vmem:[#allocation8 + $0x8] sm:$0xff]
    %v75 = vsub.f32 1.0, %v73
    %v76 = vsub.f32 1.0, %v74
    %v77 = vmin.f32 %v71, 0.0
    %v78 = vmin.f32 %v72, 0.0
    %v79 = vand.u32 2147483647, %v71
    %v80 = vand.u32 2147483647, %v72
    %v81 = vsub.f32 0.0, %v79
    %v82 = vsub.f32 0.0, %v80
    %v83 = vmul.f32 %v81, 1.442695
    %v84 = vpow.pop %v83
    %v85 = vmul.f32 %v82, 1.442695
    %v86 = vpow.pop %v85
    %v87 = vadd.f32 %v84, 1.0
    %v88 = vlog2.pop %v87
    %v89 = vmul.f32 %v88, 0.6931472
    %v90 = vmul.f32 -0.5, %v84
    %v91 = vadd.f32 %v90, 1.0
    %v92 = vmul.f32 %v91, %v84
    %v93 = vand.u32 2147483647, %v84
    %vm94 = vcmp.lt.f32.partialorder %v93, 0.0004427343
    %v95 = vsel %vm94, %v92, %v89
    %v96 = vadd.f32 %v86, 1.0
    %v97 = vlog2.pop %v96
    %v98 = vmul.f32 %v97, 0.6931472
    %v99 = vmul.f32 -0.5, %v86
    %v100 = vadd.f32 %v99, 1.0
    %v101 = vmul.f32 %v100, %v86
    %v102 = vand.u32 2147483647, %v86
    %vm103 = vcmp.lt.f32.partialorder %v102, 0.0004427343
    %v104 = vsel %vm103, %v101, %v98
    %v105 = vsub.f32 %v77, %v95
    %v106 = vsub.f32 %v78, %v104
    %v107 = vsub.f32 %v105, %v71
    %v108 = vsub.f32 %v106, %v72
    %v109 = vld [vmem:[#allocation2] sm:$0xff]
    %v110 = vadd.f32 %v73, %v74
    %v111 = vadd.f32 %v109, %v110
    %112 = vst [vmem:[#allocation2] sm:$0xff] %v111
    %v113 = vld [vmem:[#allocation3] sm:$0xff]
    %v114 = vmul.f32 %v73, %v105
    %v115 = vmul.f32 %v74, %v106
    %v116 = vadd.f32 %v114, %v115
    %v117 = vadd.f32 %v113, %v116
    %118 = vst [vmem:[#allocation3] sm:$0xff] %v117
    %v119 = vld [vmem:[#allocation4] sm:$0xff]
    %v120 = vmul.f32 %v75, %v107
    %v121 = vmul.f32 %v76, %v108
    %v122 = vadd.f32 %v120, %v121
    %v123 = vadd.f32 %v119, %v122
    %124 = vst [vmem:[#allocation4] sm:$0xff] %v123
    // Predicated region
    $region22: #{tpu_custom_call.1} parent=1 // pred_check
      %p125 = pneg %p64
    $region23: #{tpu_custom_call.1} parent=1 // pred_check_branch
      %127 = sbr.rel (%p125) target = $region25
    $region24: #{tpu_custom_call.1} parent=1 // pred_region
      %v128 = vld [vmem:[#allocation2] sm:$0xff]
      %129 = vst [vmem:[#allocation10] sm:$0xff] %v128
      %v130 = vld [vmem:[#allocation3] sm:$0xff]
      %131 = vst [vmem:[#allocation11] sm:$0xff] %v130
      %v132 = vld [vmem:[#allocation4] sm:$0xff]
      %133 = vst [vmem:[#allocation13] sm:$0xff] %v132
    $region25: #{tpu_custom_call.1} parent=1 // pred_fallthru
      _
    // Predicated region
    $region26: #{tpu_custom_call.1} parent=1 // pred_check
      _
    $region27: #{tpu_custom_call.1} parent=1 // pred_check_branch
      %135 = sbr.rel (0) target = $region29
    $region28: #{tpu_custom_call.1} parent=1 // pred_region
      %s137 = ssub.s32 128, 128
      %138 = vsyncadd [#allocation7], %s137
      %s140 = sshll.u32 [#allocation10], 4
      %s141 = int_to_ptr.vmem [resolvable:$true] %s140
      %143 = dma.vmem_to_hbm [thread:$0]  %s141, 128, %s2, [#allocation7]
    $region29: #{tpu_custom_call.1} parent=1 // pred_fallthru
      _
    // Predicated region
    $region30: #{tpu_custom_call.1} parent=1 // pred_check
      _
    $region31: #{tpu_custom_call.1} parent=1 // pred_check_branch
      %145 = sbr.rel (0) target = $region33
    $region32: #{tpu_custom_call.1} parent=1 // pred_region
      %s147 = ssub.s32 128, 128
      %148 = vsyncadd [#allocation12], %s147
      %s150 = sshll.u32 [#allocation11], 4
      %s151 = int_to_ptr.vmem [resolvable:$true] %s150
      %153 = dma.vmem_to_hbm [thread:$0]  %s151, 128, %s3, [#allocation12]
    $region33: #{tpu_custom_call.1} parent=1 // pred_fallthru
      _
    // Predicated region
    $region34: #{tpu_custom_call.1} parent=1 // pred_check
      _
    $region35: #{tpu_custom_call.1} parent=1 // pred_check_branch
      %155 = sbr.rel (0) target = $region37
    $region36: #{tpu_custom_call.1} parent=1 // pred_region
      %s157 = ssub.s32 128, 128
      %158 = vsyncadd [#allocation12], %s157
      %s160 = sshll.u32 [#allocation13], 4
      %s161 = int_to_ptr.vmem [resolvable:$true] %s160
      %163 = dma.vmem_to_hbm [thread:$0]  %s161, 128, %s4, [#allocation12]
    $region37: #{tpu_custom_call.1} parent=1 // pred_fallthru
      _
    // Predicated region
    $region38: #{tpu_custom_call.1} parent=1 // pred_check
      _
    $region39: #{tpu_custom_call.1} parent=1 // pred_check_branch
      %165 = sbr.rel (0) target = $region41
    $region40: #{tpu_custom_call.1} parent=1 // pred_region
      %166 = dma.done [#allocation7], 128
    $region41: #{tpu_custom_call.1} parent=1 // pred_fallthru
      _
    // Predicated region
    $region42: #{tpu_custom_call.1} parent=1 // pred_check
      _
    $region43: #{tpu_custom_call.1} parent=1 // pred_check_branch
      %168 = sbr.rel (0) target = $region45
    $region44: #{tpu_custom_call.1} parent=1 // pred_region
      %169 = dma.done [#allocation12], 128
    $region45: #{tpu_custom_call.1} parent=1 // pred_fallthru
      _
    // Predicated region
    $region46: #{tpu_custom_call.1} parent=1 // pred_check
      _
    $region47: #{tpu_custom_call.1} parent=1 // pred_check_branch
      %171 = sbr.rel (0) target = $region49
    $region48: #{tpu_custom_call.1} parent=1 // pred_region
      %172 = dma.done [#allocation12], 128
    $region49: #{tpu_custom_call.1} parent=1 // pred_fallthru
      _
    %173 = vsyncpa [#allocation6], 1
    %174 = vsyncpa [#allocation9], 1
    %175 = vsyncpa [#allocation7], 1
    %176 = vsyncpa [#allocation12], 1

</llo_original>
